<compile_context>
chip_gen: v5e
topology: v5e:2x2
jax: 0.10.0
libtpu: 0.0.40
codegen_flags: <defaults>
</compile_context>

<pallas_src>
import functools

import jax
import jax.numpy as jnp
from jax.experimental import pallas as pl
from jax.experimental.pallas import tpu as pltpu

HIDDEN = 64     # logical hidden width of the PyTorch module
LANE = 128      # lane-padded hidden width used inside the kernel

_BF16_ACT_TAGS = ("v6", "v7", "7x", "trillium", "ironwood")
_TWO_CORE_TAGS = ("v7", "7x", "ironwood")


def _device_kind():
    return jax.devices()[0].device_kind.lower()


def _activation_dtype(kind):
    """bf16 activations on v6e/v7x (bf16 VPU+EUP); f32 on v5e and older."""
    return jnp.bfloat16 if any(t in kind for t in _BF16_ACT_TAGS) else jnp.float32


def _choose_block_n(n, kind):
    """Single tile for small/moderate batches (no row padding, no per-step
    overhead); aligned tiles for large batches (Pallas masks the ragged tail)."""
    two_cores = any(t in kind for t in _TWO_CORE_TAGS)
    single_tile_max = 1024 if two_cores else 4096
    if n <= single_tile_max:
        return n                       # block == full batch dim
    return 1024 if two_cores else 2048


def critic_kernel(x_ref, w1_ref, w23_ref, consts_ref, b4_ref, v_ref, *, act_dtype):
    consts = consts_ref[...]                      # (4, 128) f32: b1, b2, b3, w4-row
    b1 = consts[0:1, :].astype(act_dtype)
    b2 = consts[1:2, :].astype(act_dtype)
    b3 = consts[2:3, :].astype(act_dtype)
    w4 = consts[3:4, :]                           # (1, 128) f32; padded lanes are 0

    x = x_ref[...].astype(jnp.bfloat16)
    # Layers 1-3: bf16 MXU matmuls. With act_dtype=bf16 (v6e/v7x) the MXU pops
    # bf16 directly and bias+tanh run in bf16; with act_dtype=f32 (v5e) we
    # accumulate in f32 and only cast back to bf16 at the next MXU input.
    h = jnp.tanh(jnp.dot(x, w1_ref[...], preferred_element_type=act_dtype) + b1)
    h = jnp.tanh(jnp.dot(h.astype(jnp.bfloat16), w23_ref[0],
                         preferred_element_type=act_dtype) + b2)
    h = jnp.tanh(jnp.dot(h.astype(jnp.bfloat16), w23_ref[1],
                         preferred_element_type=act_dtype) + b3)
    # Final (padded) 128 -> 1 projection on VPU/XLU in f32; b4 is an SMEM scalar.
    v = jnp.sum(h.astype(jnp.float32) * w4, axis=-1, keepdims=True) + b4_ref[0, 0]
    v_ref[...] = v.astype(v_ref.dtype)


@functools.partial(jax.jit, static_argnames=("block_n", "act_dtype"))
def _critic_forward_impl(x, w1, w23, consts, b4, *, block_n, act_dtype):
    n, obs = x.shape
    num_tiles = pl.cdiv(n, block_n)

    cost = pl.CostEstimate(
        flops=2 * n * (obs * LANE + 2 * LANE * LANE + LANE),
        transcendentals=3 * LANE * n,
        bytes_accessed=n * (obs + 1) * 4                        # x in, v out
                       + (obs * LANE + 2 * LANE * LANE) * 2     # bf16 weights
                       + (4 * LANE + 1) * 4)                    # f32 consts + b4

    kernel = functools.partial(critic_kernel, act_dtype=act_dtype)

    return pl.pallas_call(
        kernel,
        out_shape=jax.ShapeDtypeStruct((n, 1), jnp.float32),
        grid_spec=pltpu.PrefetchScalarGridSpec(
            num_scalar_prefetch=0,
            grid=(num_tiles,),
            in_specs=[
                pl.BlockSpec((block_n, obs), lambda i: (i, 0)),       # x tile
                pl.BlockSpec((obs, LANE), lambda i: (0, 0)),          # W1 (bf16)
                pl.BlockSpec((2, LANE, LANE), lambda i: (0, 0, 0)),   # W2,W3 (bf16)
                pl.BlockSpec((4, LANE), lambda i: (0, 0)),            # b1,b2,b3,w4 (f32)
                pl.BlockSpec(memory_space=pltpu.MemorySpace.SMEM),    # b4 scalar
            ],
            out_specs=pl.BlockSpec((block_n, 1), lambda i: (i, 0)),
        ),
        compiler_params=pltpu.CompilerParams(
            dimension_semantics=("parallel",)),
        cost_estimate=cost,
    )(x, w1, w23, consts, b4)


def critic_forward(x, prepared_params, *, block_n=None):
    """x: [N, num_observations] f32 -> v: [N, 1] f32."""
    kind = _device_kind()
    n = x.shape[0]
    if block_n is None:
        block_n = _choose_block_n(n, kind)
    return _critic_forward_impl(x, *prepared_params,
                                block_n=int(block_n),
                                act_dtype=_activation_dtype(kind))


def orthogonal_init(key, rows, cols, gain):
    """Deterministic orthogonal init (QR-based), matching nn.init.orthogonal_
    semantics (gain * semi-orthogonal matrix of shape [rows, cols])."""
    big = max(rows, cols)
    a = jax.random.normal(key, (big, big), dtype=jnp.float32)
    q, r = jnp.linalg.qr(a)
    q = q * jnp.sign(jnp.diag(r))[None, :]   # unique decomposition
    return gain * q[:rows, :cols]


def init_critic_params(key, num_observations):
    """Logical (unpadded, f32) parameters — identical to the PyTorch module,
    stored as [in, out] (transpose of PyTorch's [out, in])."""
    gain = jnp.sqrt(2.0)
    k1, k2, k3, k4 = jax.random.split(key, 4)
    w1 = orthogonal_init(k1, HIDDEN, num_observations, gain).T   # [obs, 64]
    w2 = orthogonal_init(k2, HIDDEN, HIDDEN, gain).T             # [64, 64]
    w3 = orthogonal_init(k3, HIDDEN, HIDDEN, gain).T             # [64, 64]
    w4 = orthogonal_init(k4, 1, HIDDEN, gain).T                  # [64, 1]
    b1 = jnp.zeros((1, HIDDEN), jnp.float32)
    b2 = jnp.zeros((1, HIDDEN), jnp.float32)
    b3 = jnp.zeros((1, HIDDEN), jnp.float32)
    b4 = jnp.zeros((1, 1), jnp.float32)
    return (w1, b1, w2, b2, w3, b3, w4, b4)


def prepare_critic_params(params):
    """Kernel-side parameters: pad hidden dims 64 -> 128 lanes (zeros, so the
    math is unchanged), cast MXU weights to bf16, and consolidate constants."""
    w1, b1, w2, b2, w3, b3, w4, b4 = params
    pc = LANE - HIDDEN
    w1p = jnp.pad(w1, ((0, 0), (0, pc))).astype(jnp.bfloat16)          # [obs, 128]
    w23 = jnp.stack([jnp.pad(w2, ((0, pc), (0, pc))),
                     jnp.pad(w3, ((0, pc), (0, pc)))]).astype(jnp.bfloat16)  # [2,128,128]
    consts = jnp.concatenate([
        jnp.pad(b1, ((0, 0), (0, pc))),
        jnp.pad(b2, ((0, 0), (0, pc))),
        jnp.pad(b3, ((0, 0), (0, pc))),
        jnp.pad(w4.T, ((0, 0), (0, pc))),
    ], axis=0).astype(jnp.float32)                                     # [4, 128]
    return (w1p, w23, consts, b4.astype(jnp.float32))


def critic_reference(x, params):
    """Pure-JAX f32 reference of the same forward pass (unpadded params)."""
    w1, b1, w2, b2, w3, b3, w4, b4 = params
    h = jnp.tanh(x @ w1 + b1)
    h = jnp.tanh(h @ w2 + b2)
    h = jnp.tanh(h @ w3 + b3)
    return h @ w4 + b4


if __name__ == "__main__":
    num_observations = 32
    num_actions = 4        # unused by the value head; kept for signature parity

    key = jax.random.PRNGKey(0)
    key_params, key_x1, key_x2 = jax.random.split(key, 3)

    params = init_critic_params(key_params, num_observations)
    prepared = prepare_critic_params(params)

    # bf16 MXU operands (and bf16 activations on v6e/v7x) -> relaxed tolerance.
    TOL = 1e-1

    # 1) Small batch: single grid step, block == full batch dim.
    x_small = jax.random.normal(key_x1, (8, num_observations), dtype=jnp.float32)
    v_small = jax.block_until_ready(critic_forward(x_small, prepared))
    assert v_small.shape == (8, 1), v_small.shape
    err = float(jnp.max(jnp.abs(v_small - critic_reference(x_small, params))))
    assert err < TOL, err

    # 2) Moderate ragged batch (N=300): still one tile, no host-side jnp.pad.
    x_mid = jax.random.normal(key_x2, (300, num_observations), dtype=jnp.float32)
    v_mid = jax.block_until_ready(critic_forward(x_mid, prepared))
    assert v_mid.shape == (300, 1), v_mid.shape
    err = float(jnp.max(jnp.abs(v_mid - critic_reference(x_mid, params))))
    assert err < TOL, err

    # 3) Force the multi-tile path (grid=3, ragged last tile masked by Pallas)
    #    to validate the large-batch code path at a small shape.
    v_tiled = jax.block_until_ready(critic_forward(x_mid, prepared, block_n=128))
    assert v_tiled.shape == (300, 1), v_tiled.shape
    err = float(jnp.max(jnp.abs(v_tiled - critic_reference(x_mid, params))))
    assert err < TOL, err

    print("KERNEL_OK")
</pallas_src>

<mosaic_0001>
module attributes {stable_mosaic.version = 11 : i64} {
  func.func @critic_kernel(%arg0: i32, %arg1: memref<8x32xf32, #tpu.memory_space<vmem>>, %arg2: memref<32x128xbf16, #tpu.memory_space<vmem>>, %arg3: memref<2x128x128xbf16, #tpu.memory_space<vmem>>, %arg4: memref<4x128xf32, #tpu.memory_space<vmem>>, %arg5: memref<1x1xf32, #tpu.memory_space<smem>>, %arg6: memref<8x1xf32, #tpu.memory_space<vmem>>) attributes {dimension_semantics = [#tpu.dimension_semantics<parallel>], iteration_bounds = array<i64: 1>, scalar_prefetch = 0 : i64, scratch_operands = 0 : i64, tpu.core_type = #tpu.core_type<tc>, window_params = [{transform_indices = @transform_0, window_bounds = array<i64: 8, 32>}, {pipeline_mode = #tpu.pipeline_mode<synchronous>, transform_indices = @transform_1, window_bounds = array<i64: 32, 128>}, {pipeline_mode = #tpu.pipeline_mode<synchronous>, transform_indices = @transform_2, window_bounds = array<i64: 2, 128, 128>}, {pipeline_mode = #tpu.pipeline_mode<synchronous>, transform_indices = @transform_3, window_bounds = array<i64: 4, 128>}, {transform_indices = @transform_4, window_bounds = array<i64: 1, 1>}, {transform_indices = @transform_5, window_bounds = array<i64: 8, 1>}]} {
    %c0 = arith.constant 0 : index
    %c0_0 = arith.constant 0 : index
    %0 = vector.load %arg4[%c0, %c0_0] : memref<4x128xf32, #tpu.memory_space<vmem>>, vector<4x128xf32>
    %1 = vector.extract_strided_slice %0 {offsets = [0, 0], sizes = [1, 128], strides = [1, 1]} : vector<4x128xf32> to vector<1x128xf32>
    %2 = vector.extract_strided_slice %0 {offsets = [1, 0], sizes = [1, 128], strides = [1, 1]} : vector<4x128xf32> to vector<1x128xf32>
    %3 = vector.extract_strided_slice %0 {offsets = [2, 0], sizes = [1, 128], strides = [1, 1]} : vector<4x128xf32> to vector<1x128xf32>
    %4 = vector.extract_strided_slice %0 {offsets = [3, 0], sizes = [1, 128], strides = [1, 1]} : vector<4x128xf32> to vector<1x128xf32>
    %c0_1 = arith.constant 0 : index
    %c0_2 = arith.constant 0 : index
    %5 = vector.load %arg1[%c0_1, %c0_2] : memref<8x32xf32, #tpu.memory_space<vmem>>, vector<8x32xf32>
    %6 = arith.truncf %5 : vector<8x32xf32> to vector<8x32xbf16>
    %c0_3 = arith.constant 0 : index
    %c0_4 = arith.constant 0 : index
    %7 = vector.load %arg2[%c0_3, %c0_4] : memref<32x128xbf16, #tpu.memory_space<vmem>>, vector<32x128xbf16>
    %cst = arith.constant dense<0.000000e+00> : vector<8x128xf32>
    %8 = tpu.matmul %6, %7, %cst {dimension_numbers = #tpu.dot_dimension_numbers<[1], [0], [0], [1], [0, 0, 1, 1], [], []>} : vector<8x32xbf16>, vector<32x128xbf16>, vector<8x128xf32> -> vector<8x128xf32>
    %9 = vector.broadcast %1 : vector<1x128xf32> to vector<8x128xf32>
    %10 = arith.addf %8, %9 : vector<8x128xf32>
    %11 = math.tanh %10 : vector<8x128xf32>
    %12 = arith.truncf %11 : vector<8x128xf32> to vector<8x128xbf16>
    %c0_5 = arith.constant 0 : index
    %c0_6 = arith.constant 0 : index
    %c0_7 = arith.constant 0 : index
    %13 = vector.load %arg3[%c0_5, %c0_6, %c0_7] : memref<2x128x128xbf16, #tpu.memory_space<vmem>>, vector<1x128x128xbf16>
    %14 = vector.shape_cast %13 : vector<1x128x128xbf16> to vector<128x128xbf16>
    %cst_8 = arith.constant dense<0.000000e+00> : vector<8x128xf32>
    %15 = tpu.matmul %12, %14, %cst_8 {dimension_numbers = #tpu.dot_dimension_numbers<[1], [0], [0], [1], [0, 0, 1, 1], [], []>} : vector<8x128xbf16>, vector<128x128xbf16>, vector<8x128xf32> -> vector<8x128xf32>
    %16 = vector.broadcast %2 : vector<1x128xf32> to vector<8x128xf32>
    %17 = arith.addf %15, %16 : vector<8x128xf32>
    %18 = math.tanh %17 : vector<8x128xf32>
    %19 = arith.truncf %18 : vector<8x128xf32> to vector<8x128xbf16>
    %c1 = arith.constant 1 : index
    %c0_9 = arith.constant 0 : index
    %c0_10 = arith.constant 0 : index
    %20 = vector.load %arg3[%c1, %c0_9, %c0_10] : memref<2x128x128xbf16, #tpu.memory_space<vmem>>, vector<1x128x128xbf16>
    %21 = vector.shape_cast %20 : vector<1x128x128xbf16> to vector<128x128xbf16>
    %cst_11 = arith.constant dense<0.000000e+00> : vector<8x128xf32>
    %22 = tpu.matmul %19, %21, %cst_11 {dimension_numbers = #tpu.dot_dimension_numbers<[1], [0], [0], [1], [0, 0, 1, 1], [], []>} : vector<8x128xbf16>, vector<128x128xbf16>, vector<8x128xf32> -> vector<8x128xf32>
    %23 = vector.broadcast %3 : vector<1x128xf32> to vector<8x128xf32>
    %24 = arith.addf %22, %23 : vector<8x128xf32>
    %25 = math.tanh %24 : vector<8x128xf32>
    %26 = vector.broadcast %4 : vector<1x128xf32> to vector<8x128xf32>
    %27 = arith.mulf %25, %26 : vector<8x128xf32>
    %cst_12 = arith.constant dense<0.000000e+00> : vector<8xf32>
    %28 = vector.multi_reduction <add>, %27, %cst_12 [1] : vector<8x128xf32> to vector<8xf32>
    %29 = vector.shape_cast %28 : vector<8xf32> to vector<8x1xf32>
    %c0_13 = arith.constant 0 : index
    %c0_14 = arith.constant 0 : index
    %30 = memref.load %arg5[%c0_13, %c0_14] : memref<1x1xf32, #tpu.memory_space<smem>>
    %31 = vector.broadcast %30 : f32 to vector<8x1xf32>
    %32 = arith.addf %29, %31 : vector<8x1xf32>
    %c0_15 = arith.constant 0 : index
    %c0_16 = arith.constant 0 : index
    %33 = vector.load %arg6[%c0_15, %c0_16] : memref<8x1xf32, #tpu.memory_space<vmem>>, vector<8x1xf32>
    tpu.vector_store %arg6[%c0_15, %c0_16], %32 {strides = array<i32>} : memref<8x1xf32, #tpu.memory_space<vmem>>, vector<8x1xf32>,
    return
  }
  func.func @transform_0(%arg0: i32) -> (i32, i32) {
    %c0_i32 = arith.constant 0 : i32
    %c0_i32_0 = arith.constant 0 : i32
    return %arg0, %c0_i32 : i32, i32
  }
  func.func @transform_1(%arg0: i32) -> (i32, i32) {
    %c0_i32 = arith.constant 0 : i32
    %c0_i32_0 = arith.constant 0 : i32
    %c0_i32_1 = arith.constant 0 : i32
    return %c0_i32, %c0_i32_0 : i32, i32
  }
  func.func @transform_2(%arg0: i32) -> (i32, i32, i32) {
    %c0_i32 = arith.constant 0 : i32
    %c0_i32_0 = arith.constant 0 : i32
    %c0_i32_1 = arith.constant 0 : i32
    %c0_i32_2 = arith.constant 0 : i32
    return %c0_i32, %c0_i32_0, %c0_i32_1 : i32, i32, i32
  }
  func.func @transform_3(%arg0: i32) -> (i32, i32) {
    %c0_i32 = arith.constant 0 : i32
    %c0_i32_0 = arith.constant 0 : i32
    %c0_i32_1 = arith.constant 0 : i32
    return %c0_i32, %c0_i32_0 : i32, i32
  }
  func.func @transform_4(%arg0: i32) -> (i32, i32) {
    %c0_i32 = arith.constant 0 : i32
    %c0_i32_0 = arith.constant 0 : i32
    %c0_i32_1 = arith.constant 0 : i32
    return %c0_i32, %c0_i32_0 : i32, i32
  }
  func.func @transform_5(%arg0: i32) -> (i32, i32) {
    %c0_i32 = arith.constant 0 : i32
    %c0_i32_0 = arith.constant 0 : i32
    return %arg0, %c0_i32 : i32, i32
  }
}

</mosaic_0001>

<llo_original>
// kernel: _critic_forward_impl.1
$region0: #{_critic_forward_impl.1}
  #allocation0 [shape = 'u32[]', space=smem, size = 0x4, offset = 0x4, fixed_abs, tag = 'smem constant byte address 0x4 - core index']
  #allocation1 [shape = 'u32[72,128]{1,0:T(1,128)}', space=vmem, size = 0x9000, scoped, tag = 'internal scratch']
  #allocation2 [shape = 'f32[1,1]{1,0:T(1,128)S(6)}', space=smem, size = 0x200, scoped, tag = 'scoped memory for _critic_forward_impl.1']
  %s0 = inlined_call_operand.hbm [shape: f32[8,32], index: 0, kind: input, shape index: {}]
  %s1 = inlined_call_operand.hbm [shape: bf16[32,128], index: 1, kind: input, shape index: {}]
  %s2 = inlined_call_operand.hbm [shape: bf16[2,128,128], index: 2, kind: input, shape index: {}]
  %s3 = inlined_call_operand.vmem [shape: f32[4,128], index: 3, kind: input, shape index: {}]
  %s4 = inlined_call_operand.<no memory space> [shape: f32[1,1], index: 4, kind: input, shape index: {}]
  %s5 = inlined_call_operand.vmem [shape: f32[8,1], index: 5, kind: output, shape index: {}]
  %s6 = sld [smem:[#allocation0]]
  $region42: #{_critic_forward_impl.1} parent=0
    _
  %s8 = ssub.s32 1, %s6
  %s9 = scalar_select 0, %s8, %s6
  %10 = sst [smem:[#allocation2]] %s4
  $region1: #{_critic_forward_impl.1} parent=0
    #allocation3 [shape = 'u8[4096]{0}', space=vmem, size = 0x1000, scoped, tag = 'input window, operand 0, single buffered']
    #allocation4 [shape = 's32[1]{0}', space=sflag, size = 0x4, scoped, tag = 'scoped memory for _critic_forward_impl.1']
    #allocation5 [shape = 'u8[8192]{0}', space=vmem, size = 0x2000, scoped, tag = 'input window, operand 1, single buffered']
    #allocation6 [shape = 's32[1]{0}', space=sflag, size = 0x4, scoped, tag = 'scoped memory for _critic_forward_impl.1']
    #allocation7 [shape = 'u8[65536]{0}', space=vmem, size = 0x10000, scoped, tag = 'input window, operand 2, single buffered']
    %11 = vsyncpa [#allocation4], 0
    %12 = vsyncpa [#allocation6], 0
    // Predicated region
    $region2: #{_critic_forward_impl.1} parent=1 // pred_check
      _
    $region3: #{_critic_forward_impl.1} parent=1 // pred_check_branch
      %14 = sbr.rel (0) target = $region5
    $region4: #{_critic_forward_impl.1} parent=1 // pred_region
      %16 = vsyncadd [#allocation4], 0
      %s18 = sshll.u32 %s0, 4
      %s19 = int_to_ptr.hbm [resolvable:$true] %s18
      %s20 = sshll.u32 [#allocation3], 4
      %s21 = int_to_ptr.vmem [resolvable:$true] %s20
      %23 = dma.hbm_to_vmem [thread:$0]  %s19, 128, %s21, [#allocation4]
    $region5: #{_critic_forward_impl.1} parent=1 // pred_fallthru
      _
    // Predicated region
    $region6: #{_critic_forward_impl.1} parent=1 // pred_check
      _
    $region7: #{_critic_forward_impl.1} parent=1 // pred_check_branch
      %25 = sbr.rel (0) target = $region9
    $region8: #{_critic_forward_impl.1} parent=1 // pred_region
      %27 = vsyncadd [#allocation6], 0
      %s28 = sshll.u32 %s1, 4
      %s29 = int_to_ptr.hbm [resolvable:$true] %s28
      %s30 = sshll.u32 [#allocation5], 4
      %s31 = int_to_ptr.vmem [resolvable:$true] %s30
      %36 = dma.hbm_to_vmem [thread:$0]  %s29, 256, %s31, [#allocation6], 64, 64, 4
    $region9: #{_critic_forward_impl.1} parent=1 // pred_fallthru
      _
    // Predicated region
    $region10: #{_critic_forward_impl.1} parent=1 // pred_check
      _
    $region11: #{_critic_forward_impl.1} parent=1 // pred_check_branch
      %38 = sbr.rel (0) target = $region13
    $region12: #{_critic_forward_impl.1} parent=1 // pred_region
      %40 = vsyncadd [#allocation6], 0
      %s41 = sshll.u32 %s2, 4
      %s42 = int_to_ptr.hbm [resolvable:$true] %s41
      %s43 = sshll.u32 [#allocation7], 4
      %s44 = int_to_ptr.vmem [resolvable:$true] %s43
      %49 = dma.hbm_to_vmem [thread:$0]  %s42, 2048, %s44, [#allocation6], 64, 64, 4
    $region13: #{_critic_forward_impl.1} parent=1 // pred_fallthru
      _
    // Predicated region
    $region14: #{_critic_forward_impl.1} parent=1 // pred_check
      _
    $region15: #{_critic_forward_impl.1} parent=1 // pred_check_branch
      %51 = sbr.rel (0) target = $region17
    $region16: #{_critic_forward_impl.1} parent=1 // pred_region
      _
    $region17: #{_critic_forward_impl.1} parent=1 // pred_fallthru
      _
    // Predicated region
    $region18: #{_critic_forward_impl.1} parent=1 // pred_check
      _
    $region19: #{_critic_forward_impl.1} parent=1 // pred_check_branch
      %53 = sbr.rel (0) target = $region21
    $region20: #{_critic_forward_impl.1} parent=1 // pred_region
      _
    $region21: #{_critic_forward_impl.1} parent=1 // pred_fallthru
      _
    // Predicated region
    $region22: #{_critic_forward_impl.1} parent=1 // pred_check
      _
    $region23: #{_critic_forward_impl.1} parent=1 // pred_check_branch
      %55 = sbr.rel (0) target = $region25
    $region24: #{_critic_forward_impl.1} parent=1 // pred_region
      %57 = dma.done [#allocation4], 128
    $region25: #{_critic_forward_impl.1} parent=1 // pred_fallthru
      _
    // Predicated region
    $region26: #{_critic_forward_impl.1} parent=1 // pred_check
      _
    $region27: #{_critic_forward_impl.1} parent=1 // pred_check_branch
      %59 = sbr.rel (0) target = $region29
    $region28: #{_critic_forward_impl.1} parent=1 // pred_region
      %61 = dma.done [#allocation6], 256
    $region29: #{_critic_forward_impl.1} parent=1 // pred_fallthru
      _
    // Predicated region
    $region30: #{_critic_forward_impl.1} parent=1 // pred_check
      _
    $region31: #{_critic_forward_impl.1} parent=1 // pred_check_branch
      %63 = sbr.rel (0) target = $region33
    $region32: #{_critic_forward_impl.1} parent=1 // pred_region
      %65 = dma.done [#allocation6], 2048
    $region33: #{_critic_forward_impl.1} parent=1 // pred_fallthru
      _
    %v67 = vld [vmem:[%s3] sm:$0xf]
    %v68 = vld [vmem:[#allocation3] sm:$0xff]
    %v69 = vpack.c.bf16 %v68, %v68
    %v70 = vld [vmem:[#allocation5] sm:$0xf]
    %v71 = vld [vmem:[#allocation5 + $0x4] sm:$0xf]
    %v72 = vld [vmem:[#allocation5 + $0x8] sm:$0xf]
    %v73 = vld [vmem:[#allocation5 + $0xc] sm:$0xf]
    %v74 = vperm.slane %v67, 0
    %v79 = vunpack.c.l.b16 %v70
    %v80 = vunpack.c.l.b16 %v71
    %v81 = vunpack.c.l.b16 %v72
    %v82 = vunpack.c.l.b16 %v73
    %v83 = vpack.c.b16 %v80, %v79
    %v84 = vpack.c.b16 %v82, %v81
    %vm87 = vcmask 261120
    %v89 = vsel %vm87, %v69, 0
    %91 = vmatpush.bf16.msra.mxu0 0
    %92 = vmatpush.bf16.msra.mxu0 0
    %93 = vmatpush.bf16.msra.mxu0 0
    %94 = vmatpush.bf16.msra.mxu0 0
    %95 = vmatpush.bf16.msra.mxu0 0
    %96 = vmatpush.bf16.msra.mxu0 0
    %97 = vmatpush.bf16.msra.mxu0 %v84
    %98 = vmatpush.bf16.msra.mxu0 %v83
    %99 = vmatmul.bf16.gmra.mxu0 %v89
    %v100 = vpop.f32.mrf.mxu0
    %v101 = vadd.f32 %v74, %v100
    %v102 = vpop.f32.mrf.mxu0
    %103 = vdwg.mxu0
    %v104 = vtanh.pop %v101
    %v105 = vpack.c.bf16 %v104, %v104
    %v106 = vld [vmem:[#allocation7] sm:$0xf]
    %v107 = vld [vmem:[#allocation7 + $0x4] sm:$0xf]
    %v108 = vld [vmem:[#allocation7 + $0x8] sm:$0xf]
    %v109 = vld [vmem:[#allocation7 + $0xc] sm:$0xf]
    %v110 = vld [vmem:[#allocation7 + $0x10] sm:$0xf]
    %v111 = vld [vmem:[#allocation7 + $0x14] sm:$0xf]
    %v112 = vld [vmem:[#allocation7 + $0x18] sm:$0xf]
    %v113 = vld [vmem:[#allocation7 + $0x1c] sm:$0xf]
    %v114 = vld [vmem:[#allocation7 + $0x20] sm:$0xf]
    %v115 = vld [vmem:[#allocation7 + $0x24] sm:$0xf]
    %v116 = vld [vmem:[#allocation7 + $0x28] sm:$0xf]
    %v117 = vld [vmem:[#allocation7 + $0x2c] sm:$0xf]
    %v118 = vld [vmem:[#allocation7 + $0x30] sm:$0xf]
    %v119 = vld [vmem:[#allocation7 + $0x34] sm:$0xf]
    %v120 = vld [vmem:[#allocation7 + $0x38] sm:$0xf]
    %v121 = vld [vmem:[#allocation7 + $0x3c] sm:$0xf]
    %v122 = vperm.slane %v67, 1
    %v139 = vunpack.c.l.b16 %v106
    %v140 = vunpack.c.l.b16 %v107
    %v141 = vunpack.c.l.b16 %v108
    %v142 = vunpack.c.l.b16 %v109
    %v143 = vunpack.c.l.b16 %v110
    %v144 = vunpack.c.l.b16 %v111
    %v145 = vunpack.c.l.b16 %v112
    %v146 = vunpack.c.l.b16 %v113
    %v147 = vunpack.c.l.b16 %v114
    %v148 = vunpack.c.l.b16 %v115
    %v149 = vunpack.c.l.b16 %v116
    %v150 = vunpack.c.l.b16 %v117
    %v151 = vunpack.c.l.b16 %v118
    %v152 = vunpack.c.l.b16 %v119
    %v153 = vunpack.c.l.b16 %v120
    %v154 = vunpack.c.l.b16 %v121
    %v155 = vpack.c.b16 %v140, %v139
    %v156 = vpack.c.b16 %v142, %v141
    %v157 = vpack.c.b16 %v144, %v143
    %v158 = vpack.c.b16 %v146, %v145
    %v159 = vpack.c.b16 %v148, %v147
    %v160 = vpack.c.b16 %v150, %v149
    %v161 = vpack.c.b16 %v152, %v151
    %v162 = vpack.c.b16 %v154, %v153
    %171 = vmatpush.bf16.msra.mxu0 %v162
    %172 = vmatpush.bf16.msra.mxu0 %v161
    %173 = vmatpush.bf16.msra.mxu0 %v160
    %174 = vmatpush.bf16.msra.mxu0 %v159
    %175 = vmatpush.bf16.msra.mxu0 %v158
    %176 = vmatpush.bf16.msra.mxu0 %v157
    %177 = vmatpush.bf16.msra.mxu0 %v156
    %178 = vmatpush.bf16.msra.mxu0 %v155
    %179 = vmatmul.bf16.gmra.mxu0 %v105
    %v180 = vpop.f32.mrf.mxu0
    %v181 = vadd.f32 %v122, %v180
    %v182 = vpop.f32.mrf.mxu0
    %183 = vdwg.mxu0
    %v184 = vtanh.pop %v181
    %v185 = vpack.c.bf16 %v184, %v184
    %s186 = scalar_lea.vmem [#allocation7], 64
    %v187 = vld [vmem:[%s186] sm:$0xf]
    %v188 = vld [vmem:[%s186 + $0x4] sm:$0xf]
    %v189 = vld [vmem:[%s186 + $0x8] sm:$0xf]
    %v190 = vld [vmem:[%s186 + $0xc] sm:$0xf]
    %v191 = vld [vmem:[%s186 + $0x10] sm:$0xf]
    %v192 = vld [vmem:[%s186 + $0x14] sm:$0xf]
    %v193 = vld [vmem:[%s186 + $0x18] sm:$0xf]
    %v194 = vld [vmem:[%s186 + $0x1c] sm:$0xf]
    %v195 = vld [vmem:[%s186 + $0x20] sm:$0xf]
    %v196 = vld [vmem:[%s186 + $0x24] sm:$0xf]
    %v197 = vld [vmem:[%s186 + $0x28] sm:$0xf]
    %v198 = vld [vmem:[%s186 + $0x2c] sm:$0xf]
    %v199 = vld [vmem:[%s186 + $0x30] sm:$0xf]
    %v200 = vld [vmem:[%s186 + $0x34] sm:$0xf]
    %v201 = vld [vmem:[%s186 + $0x38] sm:$0xf]
    %v202 = vld [vmem:[%s186 + $0x3c] sm:$0xf]
    %v203 = vperm.slane %v67, 2
    %v220 = vunpack.c.l.b16 %v187
    %v221 = vunpack.c.l.b16 %v188
    %v222 = vunpack.c.l.b16 %v189
    %v223 = vunpack.c.l.b16 %v190
    %v224 = vunpack.c.l.b16 %v191
    %v225 = vunpack.c.l.b16 %v192
    %v226 = vunpack.c.l.b16 %v193
    %v227 = vunpack.c.l.b16 %v194
    %v228 = vunpack.c.l.b16 %v195
    %v229 = vunpack.c.l.b16 %v196
    %v230 = vunpack.c.l.b16 %v197
    %v231 = vunpack.c.l.b16 %v198
    %v232 = vunpack.c.l.b16 %v199
    %v233 = vunpack.c.l.b16 %v200
    %v234 = vunpack.c.l.b16 %v201
    %v235 = vunpack.c.l.b16 %v202
    %v236 = vpack.c.b16 %v221, %v220
    %v237 = vpack.c.b16 %v223, %v222
    %v238 = vpack.c.b16 %v225, %v224
    %v239 = vpack.c.b16 %v227, %v226
    %v240 = vpack.c.b16 %v229, %v228
    %v241 = vpack.c.b16 %v231, %v230
    %v242 = vpack.c.b16 %v233, %v232
    %v243 = vpack.c.b16 %v235, %v234
    %252 = vmatpush.bf16.msra.mxu0 %v243
    %253 = vmatpush.bf16.msra.mxu0 %v242
    %254 = vmatpush.bf16.msra.mxu0 %v241
    %255 = vmatpush.bf16.msra.mxu0 %v240
    %256 = vmatpush.bf16.msra.mxu0 %v239
    %257 = vmatpush.bf16.msra.mxu0 %v238
    %258 = vmatpush.bf16.msra.mxu0 %v237
    %259 = vmatpush.bf16.msra.mxu0 %v236
    %260 = vmatmul.bf16.gmra.mxu0 %v185
    %v261 = vpop.f32.mrf.mxu0
    %v262 = vadd.f32 %v203, %v261
    %v263 = vpop.f32.mrf.mxu0
    %264 = vdwg.mxu0
    %v265 = vtanh.pop %v262
    %v266 = vperm.slane %v67, 3
    %v267 = vmul.f32 %v265, %v266
    %268 = vadd.xlane.f32.xlu0 %v267
    %v269 = vpop.xlane.xlu0 %268
    %s270 = sld [smem:[#allocation2]]
    %v271 = vstv %s270
    %v272 = vadd.f32 %v269, %v271
    %vm273 = vcmask 7168
    %274 = vst.msk [vmem:[%s5] sm:$0xff] %vm273, %v272
    // Predicated region
    $region34: #{_critic_forward_impl.1} parent=1 // pred_check
      _
    $region35: #{_critic_forward_impl.1} parent=1 // pred_check_branch
      %276 = sbr.rel (0) target = $region37
    $region36: #{_critic_forward_impl.1} parent=1 // pred_region
      _
    $region37: #{_critic_forward_impl.1} parent=1 // pred_fallthru
      _
    // Predicated region
    $region38: #{_critic_forward_impl.1} parent=1 // pred_check
      _
    $region39: #{_critic_forward_impl.1} parent=1 // pred_check_branch
      %278 = sbr.rel (0) target = $region41
    $region40: #{_critic_forward_impl.1} parent=1 // pred_region
      _
    $region41: #{_critic_forward_impl.1} parent=1 // pred_fallthru
      _
    %279 = vsyncpa [#allocation4], 1
    %280 = vsyncpa [#allocation6], 1

</llo_original>
